<compile_context>
chip_gen: v6e
topology: v6e:2x2x1
jax: 0.10.0
libtpu: 0.0.40
codegen_flags: <defaults>
</compile_context>

<pallas_src>
import jax
import jax.numpy as jnp
from jax.experimental import pallas as pl
from jax.experimental.pallas import tpu as pltpu

IN_DIM = 20          # fc1top in_features / bn0top features
HID_DIM = 10         # fc1/fc2/fc3 out_features / bn1top, bn2top features
NUM_CLASSES = 10
LANES = 128          # lane width for weight matrices / in-vreg intermediates
BN_EPS = 1e-5        # nn.BatchNorm1d default


def _round_up(n, m):
    return (n + m - 1) // m * m


def _fold_bn(gamma, beta, mean, var, eps=BN_EPS):
    """Inference-mode BatchNorm1d folded into y = x * scale + shift."""
    scale = gamma / jnp.sqrt(var + eps)
    shift = beta - mean * scale
    return scale.astype(jnp.float32), shift.astype(jnp.float32)


def _row(v, width):
    """(n,) -> (1, width) zero-padded row vector (broadcast along sublanes)."""
    v = jnp.asarray(v, jnp.float32).reshape(-1)
    return jnp.pad(v, (0, width - v.shape[0])).reshape(1, width)


def _mat(w, rows, cols):
    """(r, c) -> (rows, cols) zero-padded matrix; weights stored (in, out)."""
    w = jnp.asarray(w, jnp.float32)
    return jnp.pad(w, ((0, rows - w.shape[0]), (0, cols - w.shape[1])))


def _top_kernel(x_ref,
                s0_ref, t0_ref, w1_ref, b1_ref,
                s1_ref, t1_ref, w2_ref, b2_ref,
                s2_ref, t2_ref, w3_ref, b3_ref,
                out_ref):
    f32 = jnp.float32

    # layer 1: relu(bn0(x)) @ W1 + b1      (x tile is lane-narrow: (tile, 20))
    h = jnp.maximum(x_ref[...] * s0_ref[...] + t0_ref[...], 0.0)
    h = jnp.dot(h, w1_ref[...], preferred_element_type=f32) + b1_ref[...]

    # layer 2: relu(bn1(h)) @ W2 + b2      (intermediates live at 128 lanes)
    h = jnp.maximum(h * s1_ref[...] + t1_ref[...], 0.0)
    h = jnp.dot(h, w2_ref[...], preferred_element_type=f32) + b2_ref[...]

    # layer 3: relu(bn2(h)) @ W3 + b3
    h = jnp.maximum(h * s2_ref[...] + t2_ref[...], 0.0)
    logits = jnp.dot(h, w3_ref[...], preferred_element_type=f32) + b3_ref[...]

    # log_softmax over the first NUM_CLASSES lanes (the rest are zero padding),
    # then store only the 10 real class lanes.
    lane = jax.lax.broadcasted_iota(jnp.int32, logits.shape, dimension=1)
    valid = lane < NUM_CLASSES
    m = jnp.max(jnp.where(valid, logits, jnp.float32(-1e30)),
                axis=-1, keepdims=True)
    z = logits - m
    denom = jnp.sum(jnp.where(valid, jnp.exp(z), 0.0), axis=-1, keepdims=True)
    out_ref[...] = (z - jnp.log(denom))[:, :NUM_CLASSES].astype(out_ref.dtype)


def top_model_forward(x, params, *, batch_tile=None):
    """Forward pass of VanillaTopModelForCifar10 as one fused Pallas kernel.

    x: (B, 20) float32.
    params: Linear weights stored (in_features, out_features) (transpose of
      PyTorch's (out, in)), biases (out,), and bn{0,1,2}_{gamma,beta,mean,var}.
    Returns (B, 10) log-probabilities (inference-mode BatchNorm).
    """
    B, in_dim = x.shape
    assert in_dim == IN_DIM

    # Fold inference-mode BN into scale/shift.
    s0, t0 = _fold_bn(params["bn0_gamma"], params["bn0_beta"],
                      params["bn0_mean"], params["bn0_var"])
    s1, t1 = _fold_bn(params["bn1_gamma"], params["bn1_beta"],
                      params["bn1_mean"], params["bn1_var"])
    s2, t2 = _fold_bn(params["bn2_gamma"], params["bn2_beta"],
                      params["bn2_mean"], params["bn2_var"])

    # Layer-0 affine matches x's natural 20-lane width; everything downstream
    # is lane-padded to 128 (free: constants are VMEM-resident, intermediates
    # are vreg-only).
    s0p, t0p = _row(s0, IN_DIM), _row(t0, IN_DIM)
    w1p, b1p = _mat(params["w1"], IN_DIM, LANES), _row(params["b1"], LANES)
    s1p, t1p = _row(s1, LANES), _row(t1, LANES)
    w2p, b2p = _mat(params["w2"], LANES, LANES), _row(params["b2"], LANES)
    s2p, t2p = _row(s2, LANES), _row(t2, LANES)
    w3p, b3p = _mat(params["w3"], LANES, LANES), _row(params["b3"], LANES)

    # Batch tiling: default 1024 rows (sweep 512-4096 for huge batches),
    # multiple of 8 sublanes; pad B so every grid step sees a full tile.
    if batch_tile is None:
        batch_tile = min(1024, _round_up(B, 8))
    batch_tile = max(8, _round_up(batch_tile, 8))
    B_pad = _round_up(B, batch_tile)
    x = jnp.pad(x.astype(jnp.float32), ((0, B_pad - B), (0, 0)))
    grid = (B_pad // batch_tile,)

    row_map = lambda i: (i, 0)
    const_map = lambda i: (0, 0)
    resident = lambda a: pl.BlockSpec(a.shape, const_map)

    flops = B_pad * (2 * (IN_DIM * LANES + 2 * LANES * LANES) + 12 * LANES)
    bytes_accessed = 4 * (B_pad * (IN_DIM + NUM_CLASSES)        # x in + out
                          + (IN_DIM + 2 * LANES) * LANES        # weights
                          + 2 * IN_DIM + 8 * LANES)             # biases/BN
    cost = pl.CostEstimate(flops=int(flops),
                           transcendentals=int(B_pad * (LANES + 1)),
                           bytes_accessed=int(bytes_accessed))

    out = pl.pallas_call(
        _top_kernel,
        out_shape=jax.ShapeDtypeStruct((B_pad, NUM_CLASSES), jnp.float32),
        grid_spec=pltpu.PrefetchScalarGridSpec(
            num_scalar_prefetch=0,
            grid=grid,
            in_specs=[
                pl.BlockSpec((batch_tile, IN_DIM), row_map),
                resident(s0p), resident(t0p), resident(w1p), resident(b1p),
                resident(s1p), resident(t1p), resident(w2p), resident(b2p),
                resident(s2p), resident(t2p), resident(w3p), resident(b3p),
            ],
            out_specs=pl.BlockSpec((batch_tile, NUM_CLASSES), row_map),
        ),
        compiler_params=pltpu.CompilerParams(
            dimension_semantics=("parallel",)),
        cost_estimate=cost,
    )(x,
      s0p, t0p, w1p, b1p,
      s1p, t1p, w2p, b2p,
      s2p, t2p, w3p, b3p)

    # Slice off only the batch padding (output is already exactly 10 classes).
    return out[:B]


def init_params(key):
    """Kaiming-normal linear weights (matching weights_init) + random BN stats."""
    keys = jax.random.split(key, 18)
    p = {}

    def kaiming(k, fan_in, fan_out):
        # torch.nn.init.kaiming_normal_: std = sqrt(2 / fan_in); stored (in, out).
        return (jax.random.normal(k, (fan_in, fan_out), jnp.float32)
                * jnp.sqrt(2.0 / fan_in))

    def lin_bias(k, fan_in, fan_out):
        bound = 1.0 / jnp.sqrt(fan_in)
        return jax.random.uniform(k, (fan_out,), jnp.float32, -bound, bound)

    p["w1"], p["b1"] = kaiming(keys[0], IN_DIM, HID_DIM), lin_bias(keys[1], IN_DIM, HID_DIM)
    p["w2"], p["b2"] = kaiming(keys[2], HID_DIM, HID_DIM), lin_bias(keys[3], HID_DIM, HID_DIM)
    p["w3"], p["b3"] = kaiming(keys[4], HID_DIM, HID_DIM), lin_bias(keys[5], HID_DIM, HID_DIM)

    idx = 6
    for name, n in (("bn0", IN_DIM), ("bn1", HID_DIM), ("bn2", HID_DIM)):
        p[f"{name}_gamma"] = jax.random.uniform(keys[idx], (n,), jnp.float32, 0.5, 1.5)
        p[f"{name}_beta"] = 0.1 * jax.random.normal(keys[idx + 1], (n,), jnp.float32)
        p[f"{name}_mean"] = 0.5 * jax.random.normal(keys[idx + 2], (n,), jnp.float32)
        p[f"{name}_var"] = jax.random.uniform(keys[idx + 3], (n,), jnp.float32, 0.5, 1.5)
        idx += 4
    return p


def top_model_forward_ref(x, p):
    """Pure-JAX reference (inference-mode BatchNorm)."""
    def bn(v, name):
        return ((v - p[f"{name}_mean"]) / jnp.sqrt(p[f"{name}_var"] + BN_EPS)
                * p[f"{name}_gamma"] + p[f"{name}_beta"])

    h = jnp.maximum(bn(x, "bn0"), 0.0) @ p["w1"] + p["b1"]
    h = jnp.maximum(bn(h, "bn1"), 0.0) @ p["w2"] + p["b2"]
    h = jnp.maximum(bn(h, "bn2"), 0.0) @ p["w3"] + p["b3"]
    return jax.nn.log_softmax(h, axis=-1)


if __name__ == "__main__":
    key = jax.random.PRNGKey(0)
    kx, kp = jax.random.split(key)

    batch = 8
    x = jax.random.normal(kx, (batch, IN_DIM), jnp.float32)
    params = init_params(kp)

    out = top_model_forward(x, params)
    jax.block_until_ready(out)

    out_ref = top_model_forward_ref(x, params)
    assert out.shape == (batch, NUM_CLASSES)
    assert bool(jnp.all(jnp.isfinite(out)))
    max_err = float(jnp.max(jnp.abs(out - out_ref)))
    assert jnp.allclose(out, out_ref, atol=5e-4, rtol=5e-4), max_err

    print("KERNEL_OK")
</pallas_src>

<mosaic_0001>
module attributes {stable_mosaic.version = 11 : i64} {
  func.func @_top_kernel(%arg0: i32, %arg1: memref<8x20xf32, #tpu.memory_space<vmem>>, %arg2: memref<1x20xf32, #tpu.memory_space<vmem>>, %arg3: memref<1x20xf32, #tpu.memory_space<vmem>>, %arg4: memref<20x128xf32, #tpu.memory_space<vmem>>, %arg5: memref<1x128xf32, #tpu.memory_space<vmem>>, %arg6: memref<1x128xf32, #tpu.memory_space<vmem>>, %arg7: memref<1x128xf32, #tpu.memory_space<vmem>>, %arg8: memref<128x128xf32, #tpu.memory_space<vmem>>, %arg9: memref<1x128xf32, #tpu.memory_space<vmem>>, %arg10: memref<1x128xf32, #tpu.memory_space<vmem>>, %arg11: memref<1x128xf32, #tpu.memory_space<vmem>>, %arg12: memref<128x128xf32, #tpu.memory_space<vmem>>, %arg13: memref<1x128xf32, #tpu.memory_space<vmem>>, %arg14: memref<8x10xf32, #tpu.memory_space<vmem>>) attributes {dimension_semantics = [#tpu.dimension_semantics<parallel>], iteration_bounds = array<i64: 1>, scalar_prefetch = 0 : i64, scratch_operands = 0 : i64, tpu.core_type = #tpu.core_type<tc>, window_params = [{transform_indices = @transform_0, window_bounds = array<i64: 8, 20>}, {pipeline_mode = #tpu.pipeline_mode<synchronous>, transform_indices = @transform_1, window_bounds = array<i64: 1, 20>}, {pipeline_mode = #tpu.pipeline_mode<synchronous>, transform_indices = @transform_2, window_bounds = array<i64: 1, 20>}, {pipeline_mode = #tpu.pipeline_mode<synchronous>, transform_indices = @transform_3, window_bounds = array<i64: 20, 128>}, {pipeline_mode = #tpu.pipeline_mode<synchronous>, transform_indices = @transform_4, window_bounds = array<i64: 1, 128>}, {pipeline_mode = #tpu.pipeline_mode<synchronous>, transform_indices = @transform_5, window_bounds = array<i64: 1, 128>}, {pipeline_mode = #tpu.pipeline_mode<synchronous>, transform_indices = @transform_6, window_bounds = array<i64: 1, 128>}, {pipeline_mode = #tpu.pipeline_mode<synchronous>, transform_indices = @transform_7, window_bounds = array<i64: 128, 128>}, {pipeline_mode = #tpu.pipeline_mode<synchronous>, transform_indices = @transform_8, window_bounds = array<i64: 1, 128>}, {pipeline_mode = #tpu.pipeline_mode<synchronous>, transform_indices = @transform_9, window_bounds = array<i64: 1, 128>}, {pipeline_mode = #tpu.pipeline_mode<synchronous>, transform_indices = @transform_10, window_bounds = array<i64: 1, 128>}, {pipeline_mode = #tpu.pipeline_mode<synchronous>, transform_indices = @transform_11, window_bounds = array<i64: 128, 128>}, {pipeline_mode = #tpu.pipeline_mode<synchronous>, transform_indices = @transform_12, window_bounds = array<i64: 1, 128>}, {transform_indices = @transform_13, window_bounds = array<i64: 8, 10>}]} {
    %c0 = arith.constant 0 : index
    %c0_0 = arith.constant 0 : index
    %0 = vector.load %arg1[%c0, %c0_0] : memref<8x20xf32, #tpu.memory_space<vmem>>, vector<8x20xf32>
    %c0_1 = arith.constant 0 : index
    %c0_2 = arith.constant 0 : index
    %1 = vector.load %arg2[%c0_1, %c0_2] : memref<1x20xf32, #tpu.memory_space<vmem>>, vector<1x20xf32>
    %2 = vector.broadcast %1 : vector<1x20xf32> to vector<8x20xf32>
    %3 = arith.mulf %0, %2 : vector<8x20xf32>
    %c0_3 = arith.constant 0 : index
    %c0_4 = arith.constant 0 : index
    %4 = vector.load %arg3[%c0_3, %c0_4] : memref<1x20xf32, #tpu.memory_space<vmem>>, vector<1x20xf32>
    %5 = vector.broadcast %4 : vector<1x20xf32> to vector<8x20xf32>
    %6 = arith.addf %3, %5 : vector<8x20xf32>
    %cst = arith.constant 0.000000e+00 : f32
    %7 = vector.broadcast %cst : f32 to vector<8x20xf32>
    %8 = arith.maximumf %6, %7 : vector<8x20xf32>
    %c0_5 = arith.constant 0 : index
    %c0_6 = arith.constant 0 : index
    %9 = vector.load %arg4[%c0_5, %c0_6] : memref<20x128xf32, #tpu.memory_space<vmem>>, vector<20x128xf32>
    %cst_7 = arith.constant dense<0.000000e+00> : vector<8x128xf32>
    %10 = tpu.matmul %8, %9, %cst_7 {dimension_numbers = #tpu.dot_dimension_numbers<[1], [0], [0], [1], [0, 0, 1, 1], [], []>} : vector<8x20xf32>, vector<20x128xf32>, vector<8x128xf32> -> vector<8x128xf32>
    %c0_8 = arith.constant 0 : index
    %c0_9 = arith.constant 0 : index
    %11 = vector.load %arg5[%c0_8, %c0_9] : memref<1x128xf32, #tpu.memory_space<vmem>>, vector<1x128xf32>
    %12 = vector.broadcast %11 : vector<1x128xf32> to vector<8x128xf32>
    %13 = arith.addf %10, %12 : vector<8x128xf32>
    %c0_10 = arith.constant 0 : index
    %c0_11 = arith.constant 0 : index
    %14 = vector.load %arg6[%c0_10, %c0_11] : memref<1x128xf32, #tpu.memory_space<vmem>>, vector<1x128xf32>
    %15 = vector.broadcast %14 : vector<1x128xf32> to vector<8x128xf32>
    %16 = arith.mulf %13, %15 : vector<8x128xf32>
    %c0_12 = arith.constant 0 : index
    %c0_13 = arith.constant 0 : index
    %17 = vector.load %arg7[%c0_12, %c0_13] : memref<1x128xf32, #tpu.memory_space<vmem>>, vector<1x128xf32>
    %18 = vector.broadcast %17 : vector<1x128xf32> to vector<8x128xf32>
    %19 = arith.addf %16, %18 : vector<8x128xf32>
    %cst_14 = arith.constant 0.000000e+00 : f32
    %20 = vector.broadcast %cst_14 : f32 to vector<8x128xf32>
    %21 = arith.maximumf %19, %20 : vector<8x128xf32>
    %c0_15 = arith.constant 0 : index
    %c0_16 = arith.constant 0 : index
    %22 = vector.load %arg8[%c0_15, %c0_16] : memref<128x128xf32, #tpu.memory_space<vmem>>, vector<128x128xf32>
    %cst_17 = arith.constant dense<0.000000e+00> : vector<8x128xf32>
    %23 = tpu.matmul %21, %22, %cst_17 {dimension_numbers = #tpu.dot_dimension_numbers<[1], [0], [0], [1], [0, 0, 1, 1], [], []>} : vector<8x128xf32>, vector<128x128xf32>, vector<8x128xf32> -> vector<8x128xf32>
    %c0_18 = arith.constant 0 : index
    %c0_19 = arith.constant 0 : index
    %24 = vector.load %arg9[%c0_18, %c0_19] : memref<1x128xf32, #tpu.memory_space<vmem>>, vector<1x128xf32>
    %25 = vector.broadcast %24 : vector<1x128xf32> to vector<8x128xf32>
    %26 = arith.addf %23, %25 : vector<8x128xf32>
    %c0_20 = arith.constant 0 : index
    %c0_21 = arith.constant 0 : index
    %27 = vector.load %arg10[%c0_20, %c0_21] : memref<1x128xf32, #tpu.memory_space<vmem>>, vector<1x128xf32>
    %28 = vector.broadcast %27 : vector<1x128xf32> to vector<8x128xf32>
    %29 = arith.mulf %26, %28 : vector<8x128xf32>
    %c0_22 = arith.constant 0 : index
    %c0_23 = arith.constant 0 : index
    %30 = vector.load %arg11[%c0_22, %c0_23] : memref<1x128xf32, #tpu.memory_space<vmem>>, vector<1x128xf32>
    %31 = vector.broadcast %30 : vector<1x128xf32> to vector<8x128xf32>
    %32 = arith.addf %29, %31 : vector<8x128xf32>
    %cst_24 = arith.constant 0.000000e+00 : f32
    %33 = vector.broadcast %cst_24 : f32 to vector<8x128xf32>
    %34 = arith.maximumf %32, %33 : vector<8x128xf32>
    %c0_25 = arith.constant 0 : index
    %c0_26 = arith.constant 0 : index
    %35 = vector.load %arg12[%c0_25, %c0_26] : memref<128x128xf32, #tpu.memory_space<vmem>>, vector<128x128xf32>
    %cst_27 = arith.constant dense<0.000000e+00> : vector<8x128xf32>
    %36 = tpu.matmul %34, %35, %cst_27 {dimension_numbers = #tpu.dot_dimension_numbers<[1], [0], [0], [1], [0, 0, 1, 1], [], []>} : vector<8x128xf32>, vector<128x128xf32>, vector<8x128xf32> -> vector<8x128xf32>
    %c0_28 = arith.constant 0 : index
    %c0_29 = arith.constant 0 : index
    %37 = vector.load %arg13[%c0_28, %c0_29] : memref<1x128xf32, #tpu.memory_space<vmem>>, vector<1x128xf32>
    %38 = vector.broadcast %37 : vector<1x128xf32> to vector<8x128xf32>
    %39 = arith.addf %36, %38 : vector<8x128xf32>
    %40 = tpu.iota {dimensions = array<i32: 1>} : vector<8x128xi32>
    %c10_i32 = arith.constant 10 : i32
    %41 = vector.broadcast %c10_i32 : i32 to vector<8x128xi32>
    %42 = arith.cmpi slt, %40, %41 : vector<8x128xi32>
    %cst_30 = arith.constant -1.000000e+30 : f32
    %43 = vector.broadcast %cst_30 : f32 to vector<8x128xf32>
    %44 = arith.select %42, %39, %43 : vector<8x128xi1>, vector<8x128xf32>
    %cst_31 = arith.constant dense<0xFF800000> : vector<8xf32>
    %45 = vector.multi_reduction <maximumf>, %44, %cst_31 [1] : vector<8x128xf32> to vector<8xf32>
    %46 = vector.shape_cast %45 : vector<8xf32> to vector<8x1xf32>
    %47 = vector.broadcast %46 : vector<8x1xf32> to vector<8x128xf32>
    %48 = arith.subf %39, %47 : vector<8x128xf32>
    %49 = math.exp %48 : vector<8x128xf32>
    %cst_32 = arith.constant 0.000000e+00 : f32
    %50 = vector.broadcast %cst_32 : f32 to vector<8x128xf32>
    %51 = arith.select %42, %49, %50 : vector<8x128xi1>, vector<8x128xf32>
    %cst_33 = arith.constant dense<0.000000e+00> : vector<8xf32>
    %52 = vector.multi_reduction <add>, %51, %cst_33 [1] : vector<8x128xf32> to vector<8xf32>
    %53 = vector.shape_cast %52 : vector<8xf32> to vector<8x1xf32>
    %54 = math.log %53 : vector<8x1xf32>
    %55 = vector.broadcast %54 : vector<8x1xf32> to vector<8x128xf32>
    %56 = arith.subf %48, %55 : vector<8x128xf32>
    %57 = vector.extract_strided_slice %56 {offsets = [0, 0], sizes = [8, 10], strides = [1, 1]} : vector<8x128xf32> to vector<8x10xf32>
    %c0_34 = arith.constant 0 : index
    %c0_35 = arith.constant 0 : index
    %58 = vector.load %arg14[%c0_34, %c0_35] : memref<8x10xf32, #tpu.memory_space<vmem>>, vector<8x10xf32>
    tpu.vector_store %arg14[%c0_34, %c0_35], %57 {strides = array<i32>} : memref<8x10xf32, #tpu.memory_space<vmem>>, vector<8x10xf32>,
    return
  }
  func.func @transform_0(%arg0: i32) -> (i32, i32) {
    %c0_i32 = arith.constant 0 : i32
    %c0_i32_0 = arith.constant 0 : i32
    return %arg0, %c0_i32 : i32, i32
  }
  func.func @transform_1(%arg0: i32) -> (i32, i32) {
    %c0_i32 = arith.constant 0 : i32
    %c0_i32_0 = arith.constant 0 : i32
    %c0_i32_1 = arith.constant 0 : i32
    return %c0_i32, %c0_i32_0 : i32, i32
  }
  func.func @transform_2(%arg0: i32) -> (i32, i32) {
    %c0_i32 = arith.constant 0 : i32
    %c0_i32_0 = arith.constant 0 : i32
    %c0_i32_1 = arith.constant 0 : i32
    return %c0_i32, %c0_i32_0 : i32, i32
  }
  func.func @transform_3(%arg0: i32) -> (i32, i32) {
    %c0_i32 = arith.constant 0 : i32
    %c0_i32_0 = arith.constant 0 : i32
    %c0_i32_1 = arith.constant 0 : i32
    return %c0_i32, %c0_i32_0 : i32, i32
  }
  func.func @transform_4(%arg0: i32) -> (i32, i32) {
    %c0_i32 = arith.constant 0 : i32
    %c0_i32_0 = arith.constant 0 : i32
    %c0_i32_1 = arith.constant 0 : i32
    return %c0_i32, %c0_i32_0 : i32, i32
  }
  func.func @transform_5(%arg0: i32) -> (i32, i32) {
    %c0_i32 = arith.constant 0 : i32
    %c0_i32_0 = arith.constant 0 : i32
    %c0_i32_1 = arith.constant 0 : i32
    return %c0_i32, %c0_i32_0 : i32, i32
  }
  func.func @transform_6(%arg0: i32) -> (i32, i32) {
    %c0_i32 = arith.constant 0 : i32
    %c0_i32_0 = arith.constant 0 : i32
    %c0_i32_1 = arith.constant 0 : i32
    return %c0_i32, %c0_i32_0 : i32, i32
  }
  func.func @transform_7(%arg0: i32) -> (i32, i32) {
    %c0_i32 = arith.constant 0 : i32
    %c0_i32_0 = arith.constant 0 : i32
    %c0_i32_1 = arith.constant 0 : i32
    return %c0_i32, %c0_i32_0 : i32, i32
  }
  func.func @transform_8(%arg0: i32) -> (i32, i32) {
    %c0_i32 = arith.constant 0 : i32
    %c0_i32_0 = arith.constant 0 : i32
    %c0_i32_1 = arith.constant 0 : i32
    return %c0_i32, %c0_i32_0 : i32, i32
  }
  func.func @transform_9(%arg0: i32) -> (i32, i32) {
    %c0_i32 = arith.constant 0 : i32
    %c0_i32_0 = arith.constant 0 : i32
    %c0_i32_1 = arith.constant 0 : i32
    return %c0_i32, %c0_i32_0 : i32, i32
  }
  func.func @transform_10(%arg0: i32) -> (i32, i32) {
    %c0_i32 = arith.constant 0 : i32
    %c0_i32_0 = arith.constant 0 : i32
    %c0_i32_1 = arith.constant 0 : i32
    return %c0_i32, %c0_i32_0 : i32, i32
  }
  func.func @transform_11(%arg0: i32) -> (i32, i32) {
    %c0_i32 = arith.constant 0 : i32
    %c0_i32_0 = arith.constant 0 : i32
    %c0_i32_1 = arith.constant 0 : i32
    return %c0_i32, %c0_i32_0 : i32, i32
  }
  func.func @transform_12(%arg0: i32) -> (i32, i32) {
    %c0_i32 = arith.constant 0 : i32
    %c0_i32_0 = arith.constant 0 : i32
    %c0_i32_1 = arith.constant 0 : i32
    return %c0_i32, %c0_i32_0 : i32, i32
  }
  func.func @transform_13(%arg0: i32) -> (i32, i32) {
    %c0_i32 = arith.constant 0 : i32
    %c0_i32_0 = arith.constant 0 : i32
    return %arg0, %c0_i32 : i32, i32
  }
}

</mosaic_0001>

<llo_original>
// kernel: tpu_custom_call.1
$region0: #{tpu_custom_call.1}
  #allocation0 [shape = 'u32[]', space=smem, size = 0x4, offset = 0x4, fixed_abs, tag = 'smem constant byte address 0x4 - core index']
  #allocation1 [shape = 'u32[144,128]{1,0:T(1,128)}', space=vmem, size = 0x12000, scoped, tag = 'internal scratch']
  %s0 = inlined_call_operand.hbm [shape: f32[8,20], index: 0, kind: input, shape index: {}]
  %s1 = inlined_call_operand.vmem [shape: f32[1,20], index: 1, kind: input, shape index: {}]
  %s2 = inlined_call_operand.vmem [shape: f32[1,20], index: 2, kind: input, shape index: {}]
  %s3 = inlined_call_operand.hbm [shape: f32[20,128], index: 3, kind: input, shape index: {}]
  %s4 = inlined_call_operand.vmem [shape: f32[1,128], index: 4, kind: input, shape index: {}]
  %s5 = inlined_call_operand.vmem [shape: f32[1,128], index: 5, kind: input, shape index: {}]
  %s6 = inlined_call_operand.vmem [shape: f32[1,128], index: 6, kind: input, shape index: {}]
  %s7 = inlined_call_operand.hbm [shape: f32[128,128], index: 7, kind: input, shape index: {}]
  %s8 = inlined_call_operand.vmem [shape: f32[1,128], index: 8, kind: input, shape index: {}]
  %s9 = inlined_call_operand.vmem [shape: f32[1,128], index: 9, kind: input, shape index: {}]
  %s10 = inlined_call_operand.vmem [shape: f32[1,128], index: 10, kind: input, shape index: {}]
  %s11 = inlined_call_operand.hbm [shape: f32[128,128], index: 11, kind: input, shape index: {}]
  %s12 = inlined_call_operand.vmem [shape: f32[1,128], index: 12, kind: input, shape index: {}]
  %s13 = inlined_call_operand.hbm [shape: f32[8,10], index: 13, kind: output, shape index: {}]
  %s14 = sld [smem:[#allocation0]]
  $region78: #{tpu_custom_call.1} parent=0
    _
  %s16 = ssub.s32 1, %s14
  %s17 = scalar_select 0, %s16, %s14
  $region1: #{tpu_custom_call.1} parent=0
    #allocation2 [shape = 'u8[4096]{0}', space=vmem, size = 0x1000, scoped, tag = 'input window, operand 0, single buffered']
    #allocation3 [shape = 's32[1]{0}', space=sflag, size = 0x4, scoped, tag = 'scoped memory for tpu_custom_call.1']
    #allocation4 [shape = 's32[1]{0}', space=sflag, size = 0x4, scoped, tag = 'scoped memory for tpu_custom_call.1']
    #allocation5 [shape = 'u8[12288]{0}', space=vmem, size = 0x3000, scoped, tag = 'input window, operand 3, single buffered']
    #allocation6 [shape = 's32[1]{0}', space=sflag, size = 0x4, scoped, tag = 'scoped memory for tpu_custom_call.1']
    #allocation7 [shape = 'u8[65536]{0}', space=vmem, size = 0x10000, scoped, tag = 'input window, operand 7, single buffered']
    #allocation8 [shape = 'u8[65536]{0}', space=vmem, size = 0x10000, scoped, tag = 'input window, operand 11, single buffered']
    #allocation9 [shape = 's32[1]{0}', space=sflag, size = 0x4, scoped, tag = 'scoped memory for tpu_custom_call.1']
    #allocation10 [shape = 'u8[4096]{0}', space=vmem, size = 0x1000, scoped, tag = 'output window, operand 0, single buffered']
    %18 = vsyncpa [#allocation3], 0
    %19 = vsyncpa [#allocation6], 0
    %20 = vsyncpa [#allocation9], 0
    %21 = vsyncpa [#allocation4], 0
    // Predicated region
    $region2: #{tpu_custom_call.1} parent=1 // pred_check
      _
    $region3: #{tpu_custom_call.1} parent=1 // pred_check_branch
      %23 = sbr.rel (0) target = $region5
    $region4: #{tpu_custom_call.1} parent=1 // pred_region
      %s25 = ssub.s32 128, 128
      %26 = vsyncadd [#allocation3], %s25
      %s28 = sshll.u32 [#allocation2], 4
      %s29 = int_to_ptr.vmem [resolvable:$true] %s28
      %31 = dma.hbm_to_vmem [thread:$0]  %s0, 128, %s29, [#allocation3]
    $region5: #{tpu_custom_call.1} parent=1 // pred_fallthru
      _
    // Predicated region
    $region6: #{tpu_custom_call.1} parent=1 // pred_check
      _
    $region7: #{tpu_custom_call.1} parent=1 // pred_check_branch
      %33 = sbr.rel (0) target = $region9
    $region8: #{tpu_custom_call.1} parent=1 // pred_region
      _
    $region9: #{tpu_custom_call.1} parent=1 // pred_fallthru
      _
    // Predicated region
    $region10: #{tpu_custom_call.1} parent=1 // pred_check
      _
    $region11: #{tpu_custom_call.1} parent=1 // pred_check_branch
      %35 = sbr.rel (0) target = $region13
    $region12: #{tpu_custom_call.1} parent=1 // pred_region
      _
    $region13: #{tpu_custom_call.1} parent=1 // pred_fallthru
      _
    // Predicated region
    $region14: #{tpu_custom_call.1} parent=1 // pred_check
      _
    $region15: #{tpu_custom_call.1} parent=1 // pred_check_branch
      %37 = sbr.rel (0) target = $region17
    $region16: #{tpu_custom_call.1} parent=1 // pred_region
      %s39 = ssub.s32 384, 384
      %40 = vsyncadd [#allocation6], %s39
      %s41 = sshll.u32 [#allocation5], 4
      %s42 = int_to_ptr.vmem [resolvable:$true] %s41
      %47 = dma.hbm_to_vmem [thread:$0]  %s3, 384, %s42, [#allocation6], 128, 128, 8
    $region17: #{tpu_custom_call.1} parent=1 // pred_fallthru
      _
    // Predicated region
    $region18: #{tpu_custom_call.1} parent=1 // pred_check
      _
    $region19: #{tpu_custom_call.1} parent=1 // pred_check_branch
      %49 = sbr.rel (0) target = $region21
    $region20: #{tpu_custom_call.1} parent=1 // pred_region
      _
    $region21: #{tpu_custom_call.1} parent=1 // pred_fallthru
      _
    // Predicated region
    $region22: #{tpu_custom_call.1} parent=1 // pred_check
      _
    $region23: #{tpu_custom_call.1} parent=1 // pred_check_branch
      %51 = sbr.rel (0) target = $region25
    $region24: #{tpu_custom_call.1} parent=1 // pred_region
      _
    $region25: #{tpu_custom_call.1} parent=1 // pred_fallthru
      _
    // Predicated region
    $region26: #{tpu_custom_call.1} parent=1 // pred_check
      _
    $region27: #{tpu_custom_call.1} parent=1 // pred_check_branch
      %53 = sbr.rel (0) target = $region29
    $region28: #{tpu_custom_call.1} parent=1 // pred_region
      _
    $region29: #{tpu_custom_call.1} parent=1 // pred_fallthru
      _
    // Predicated region
    $region30: #{tpu_custom_call.1} parent=1 // pred_check
      _
    $region31: #{tpu_custom_call.1} parent=1 // pred_check_branch
      %55 = sbr.rel (0) target = $region33
    $region32: #{tpu_custom_call.1} parent=1 // pred_region
      %s57 = ssub.s32 2048, 2048
      %58 = vsyncadd [#allocation6], %s57
      %s59 = sshll.u32 [#allocation7], 4
      %s60 = int_to_ptr.vmem [resolvable:$true] %s59
      %65 = dma.hbm_to_vmem [thread:$0]  %s7, 2048, %s60, [#allocation6], 128, 128, 8
    $region33: #{tpu_custom_call.1} parent=1 // pred_fallthru
      _
    // Predicated region
    $region34: #{tpu_custom_call.1} parent=1 // pred_check
      _
    $region35: #{tpu_custom_call.1} parent=1 // pred_check_branch
      %67 = sbr.rel (0) target = $region37
    $region36: #{tpu_custom_call.1} parent=1 // pred_region
      _
    $region37: #{tpu_custom_call.1} parent=1 // pred_fallthru
      _
    // Predicated region
    $region38: #{tpu_custom_call.1} parent=1 // pred_check
      _
    $region39: #{tpu_custom_call.1} parent=1 // pred_check_branch
      %69 = sbr.rel (0) target = $region41
    $region40: #{tpu_custom_call.1} parent=1 // pred_region
      _
    $region41: #{tpu_custom_call.1} parent=1 // pred_fallthru
      _
    // Predicated region
    $region42: #{tpu_custom_call.1} parent=1 // pred_check
      _
    $region43: #{tpu_custom_call.1} parent=1 // pred_check_branch
      %71 = sbr.rel (0) target = $region45
    $region44: #{tpu_custom_call.1} parent=1 // pred_region
      _
    $region45: #{tpu_custom_call.1} parent=1 // pred_fallthru
      _
    // Predicated region
    $region46: #{tpu_custom_call.1} parent=1 // pred_check
      _
    $region47: #{tpu_custom_call.1} parent=1 // pred_check_branch
      %73 = sbr.rel (0) target = $region49
    $region48: #{tpu_custom_call.1} parent=1 // pred_region
      %s75 = ssub.s32 2048, 2048
      %76 = vsyncadd [#allocation9], %s75
      %s77 = sshll.u32 [#allocation8], 4
      %s78 = int_to_ptr.vmem [resolvable:$true] %s77
      %83 = dma.hbm_to_vmem [thread:$0]  %s11, 2048, %s78, [#allocation9], 128, 128, 8
    $region49: #{tpu_custom_call.1} parent=1 // pred_fallthru
      _
    // Predicated region
    $region50: #{tpu_custom_call.1} parent=1 // pred_check
      _
    $region51: #{tpu_custom_call.1} parent=1 // pred_check_branch
      %85 = sbr.rel (0) target = $region53
    $region52: #{tpu_custom_call.1} parent=1 // pred_region
      _
    $region53: #{tpu_custom_call.1} parent=1 // pred_fallthru
      _
    // Predicated region
    $region54: #{tpu_custom_call.1} parent=1 // pred_check
      _
    $region55: #{tpu_custom_call.1} parent=1 // pred_check_branch
      %87 = sbr.rel (0) target = $region57
    $region56: #{tpu_custom_call.1} parent=1 // pred_region
      %88 = dma.done [#allocation3], 128
    $region57: #{tpu_custom_call.1} parent=1 // pred_fallthru
      _
    // Predicated region
    $region58: #{tpu_custom_call.1} parent=1 // pred_check
      _
    $region59: #{tpu_custom_call.1} parent=1 // pred_check_branch
      %90 = sbr.rel (0) target = $region61
    $region60: #{tpu_custom_call.1} parent=1 // pred_region
      %91 = dma.done [#allocation6], 384
    $region61: #{tpu_custom_call.1} parent=1 // pred_fallthru
      _
    // Predicated region
    $region62: #{tpu_custom_call.1} parent=1 // pred_check
      _
    $region63: #{tpu_custom_call.1} parent=1 // pred_check_branch
      %93 = sbr.rel (0) target = $region65
    $region64: #{tpu_custom_call.1} parent=1 // pred_region
      %94 = dma.done [#allocation6], 2048
    $region65: #{tpu_custom_call.1} parent=1 // pred_fallthru
      _
    // Predicated region
    $region66: #{tpu_custom_call.1} parent=1 // pred_check
      _
    $region67: #{tpu_custom_call.1} parent=1 // pred_check_branch
      %96 = sbr.rel (0) target = $region69
    $region68: #{tpu_custom_call.1} parent=1 // pred_region
      %97 = dma.done [#allocation9], 2048
    $region69: #{tpu_custom_call.1} parent=1 // pred_fallthru
      _
    %v98 = vld [vmem:[#allocation2] sm:$0xff]
    %v99 = vld [vmem:[%s1] sm:$0x1]
    %v101 = vlaneseq
    %v102 = vshrl.u32 %v101, 7
    %v103 = vsub.s32 0, %v102
    %v104 = vrot.slane %v99, %v103
    %v106 = vmul.f32 %v98, %v104
    %v107 = vld [vmem:[%s2] sm:$0x1]
    %v109 = vlaneseq
    %v110 = vshrl.u32 %v109, 7
    %v111 = vsub.s32 0, %v110
    %v112 = vrot.slane %v107, %v111
    %v114 = vadd.f32 %v106, %v112
    %v115 = vmax.f32 %v114, 0.0
    %v116 = vld [vmem:[#allocation5] sm:$0xff]
    %v117 = vld [vmem:[#allocation5 + $0x8] sm:$0xff]
    %v118 = vld [vmem:[#allocation5 + $0x10] sm:$0xf]
    %v119 = vld [vmem:[%s4] sm:$0x1]
    %v121 = vlaneseq
    %v122 = vshrl.u32 %v121, 7
    %v123 = vsub.s32 0, %v122
    %v124 = vrot.slane %v119, %v123
    %vm126 = vcmask 162816
    %v128 = vsel %vm126, %v115, 0
    %vm130 = vcmask 1043456
    %v132 = vsel %vm130, %v118, 0
    %134 = vmatprep.subr.mxu0 0.0
    %135 = vmatpush1.msra.mxu0 0.0
    %136 = vmatprep.subr.mxu0 0.0
    %137 = vmatpush1.msra.mxu0 0.0
    %138 = vmatprep.subr.mxu0 0.0
    %139 = vmatpush1.msra.mxu0 0.0
    %140 = vmatprep.subr.mxu0 0.0
    %141 = vmatpush1.msra.mxu0 0.0
    %142 = vmatprep.subr.mxu0 0.0
    %143 = vmatpush1.msra.mxu0 0.0
    %144 = vmatprep.subr.mxu0 0.0
    %145 = vmatpush1.msra.mxu0 0.0
    %146 = vmatprep.subr.mxu0 0.0
    %147 = vmatpush1.msra.mxu0 0.0
    %148 = vmatprep.subr.mxu0 0.0
    %149 = vmatpush1.msra.mxu0 0.0
    %150 = vmatprep.subr.mxu0 0.0
    %151 = vmatpush1.msra.mxu0 0.0
    %152 = vmatprep.subr.mxu0 0.0
    %153 = vmatpush1.msra.mxu0 0.0
    %154 = vmatprep.subr.mxu0 0.0
    %155 = vmatpush1.msra.mxu0 0.0
    %156 = vmatprep.subr.mxu0 0.0
    %157 = vmatpush1.msra.mxu0 0.0
    %158 = vmatprep.subr.mxu0 0.0
    %159 = vmatpush1.msra.mxu0 0.0
    %160 = vmatprep.subr.mxu0 0.0
    %161 = vmatpush1.msra.mxu0 %v132
    %162 = vmatprep.subr.mxu0 0.0
    %163 = vmatpush1.msra.mxu0 %v117
    %164 = vmatprep.subr.mxu0 0.0
    %165 = vmatpush1.msra.mxu0 %v116
    %166 = vmatprep.subr.mxu0 0.0
    %167 = vmatpush2.msra.mxu0 0.0
    %168 = vmatprep.subr.mxu0 0.0
    %169 = vmatpush2.msra.mxu0 0.0
    %170 = vmatprep.subr.mxu0 0.0
    %171 = vmatpush2.msra.mxu0 0.0
    %172 = vmatprep.subr.mxu0 0.0
    %173 = vmatpush2.msra.mxu0 0.0
    %174 = vmatprep.subr.mxu0 0.0
    %175 = vmatpush2.msra.mxu0 0.0
    %176 = vmatprep.subr.mxu0 0.0
    %177 = vmatpush2.msra.mxu0 0.0
    %178 = vmatprep.subr.mxu0 0.0
    %179 = vmatpush2.msra.mxu0 0.0
    %180 = vmatprep.subr.mxu0 0.0
    %181 = vmatpush2.msra.mxu0 0.0
    %182 = vmatprep.subr.mxu0 0.0
    %183 = vmatpush2.msra.mxu0 0.0
    %184 = vmatprep.subr.mxu0 0.0
    %185 = vmatpush2.msra.mxu0 0.0
    %186 = vmatprep.subr.mxu0 0.0
    %187 = vmatpush2.msra.mxu0 0.0
    %188 = vmatprep.subr.mxu0 0.0
    %189 = vmatpush2.msra.mxu0 0.0
    %190 = vmatprep.subr.mxu0 0.0
    %191 = vmatpush2.msra.mxu0 0.0
    %192 = vmatprep.subr.mxu0 0.0
    %193 = vmatpush2.msra.mxu0 0.0
    %194 = vmatprep.subr.mxu0 0.0
    %195 = vmatpush2.msra.mxu0 0.0
    %196 = vmatprep.subr.mxu0 0.0
    %197 = vmatpush2.msra.mxu0 0.0
    %198 = vmatprep.mubr.f32.mxu0 0.0
    %199 = vmatmul.mubr.f32.gmra.mxu0 %v128
    %v200 = vpop.f32.mrf.mxu0
    %v201 = vadd.f32 %v124, %v200
    %v202 = vpop.f32.mrf.mxu0
    %203 = vdwg.mxu0
    %v204 = vld [vmem:[%s5] sm:$0x1]
    %v206 = vlaneseq
    %v207 = vshrl.u32 %v206, 7
    %v208 = vsub.s32 0, %v207
    %v209 = vrot.slane %v204, %v208
    %v211 = vmul.f32 %v201, %v209
    %v212 = vld [vmem:[%s6] sm:$0x1]
    %v214 = vlaneseq
    %v215 = vshrl.u32 %v214, 7
    %v216 = vsub.s32 0, %v215
    %v217 = vrot.slane %v212, %v216
    %v219 = vadd.f32 %v211, %v217
    %v220 = vmax.f32 %v219, 0.0
    %v221 = vld [vmem:[#allocation7] sm:$0xff]
    %v222 = vld [vmem:[#allocation7 + $0x8] sm:$0xff]
    %v223 = vld [vmem:[#allocation7 + $0x10] sm:$0xff]
    %v224 = vld [vmem:[#allocation7 + $0x18] sm:$0xff]
    %v225 = vld [vmem:[#allocation7 + $0x20] sm:$0xff]
    %v226 = vld [vmem:[#allocation7 + $0x28] sm:$0xff]
    %v227 = vld [vmem:[#allocation7 + $0x30] sm:$0xff]
    %v228 = vld [vmem:[#allocation7 + $0x38] sm:$0xff]
    %v229 = vld [vmem:[#allocation7 + $0x40] sm:$0xff]
    %v230 = vld [vmem:[#allocation7 + $0x48] sm:$0xff]
    %v231 = vld [vmem:[#allocation7 + $0x50] sm:$0xff]
    %v232 = vld [vmem:[#allocation7 + $0x58] sm:$0xff]
    %v233 = vld [vmem:[#allocation7 + $0x60] sm:$0xff]
    %v234 = vld [vmem:[#allocation7 + $0x68] sm:$0xff]
    %v235 = vld [vmem:[#allocation7 + $0x70] sm:$0xff]
    %v236 = vld [vmem:[#allocation7 + $0x78] sm:$0xff]
    %v237 = vld [vmem:[%s8] sm:$0x1]
    %v239 = vlaneseq
    %v240 = vshrl.u32 %v239, 7
    %v241 = vsub.s32 0, %v240
    %v242 = vrot.slane %v237, %v241
    %244 = vmatprep.subr.mxu0 0.0
    %245 = vmatpush1.msra.mxu0 %v236
    %246 = vmatprep.subr.mxu0 0.0
    %247 = vmatpush1.msra.mxu0 %v235
    %248 = vmatprep.subr.mxu0 0.0
    %249 = vmatpush1.msra.mxu0 %v234
    %250 = vmatprep.subr.mxu0 0.0
    %251 = vmatpush1.msra.mxu0 %v233
    %252 = vmatprep.subr.mxu0 0.0
    %253 = vmatpush1.msra.mxu0 %v232
    %254 = vmatprep.subr.mxu0 0.0
    %255 = vmatpush1.msra.mxu0 %v231
    %256 = vmatprep.subr.mxu0 0.0
    %257 = vmatpush1.msra.mxu0 %v230
    %258 = vmatprep.subr.mxu0 0.0
    %259 = vmatpush1.msra.mxu0 %v229
    %260 = vmatprep.subr.mxu0 0.0
    %261 = vmatpush1.msra.mxu0 %v228
    %262 = vmatprep.subr.mxu0 0.0
    %263 = vmatpush1.msra.mxu0 %v227
    %264 = vmatprep.subr.mxu0 0.0
    %265 = vmatpush1.msra.mxu0 %v226
    %266 = vmatprep.subr.mxu0 0.0
    %267 = vmatpush1.msra.mxu0 %v225
    %268 = vmatprep.subr.mxu0 0.0
    %269 = vmatpush1.msra.mxu0 %v224
    %270 = vmatprep.subr.mxu0 0.0
    %271 = vmatpush1.msra.mxu0 %v223
    %272 = vmatprep.subr.mxu0 0.0
    %273 = vmatpush1.msra.mxu0 %v222
    %274 = vmatprep.subr.mxu0 0.0
    %275 = vmatpush1.msra.mxu0 %v221
    %276 = vmatprep.subr.mxu0 0.0
    %277 = vmatpush2.msra.mxu0 0.0
    %278 = vmatprep.subr.mxu0 0.0
    %279 = vmatpush2.msra.mxu0 0.0
    %280 = vmatprep.subr.mxu0 0.0
    %281 = vmatpush2.msra.mxu0 0.0
    %282 = vmatprep.subr.mxu0 0.0
    %283 = vmatpush2.msra.mxu0 0.0
    %284 = vmatprep.subr.mxu0 0.0
    %285 = vmatpush2.msra.mxu0 0.0
    %286 = vmatprep.subr.mxu0 0.0
    %287 = vmatpush2.msra.mxu0 0.0
    %288 = vmatprep.subr.mxu0 0.0
    %289 = vmatpush2.msra.mxu0 0.0
    %290 = vmatprep.subr.mxu0 0.0
    %291 = vmatpush2.msra.mxu0 0.0
    %292 = vmatprep.subr.mxu0 0.0
    %293 = vmatpush2.msra.mxu0 0.0
    %294 = vmatprep.subr.mxu0 0.0
    %295 = vmatpush2.msra.mxu0 0.0
    %296 = vmatprep.subr.mxu0 0.0
    %297 = vmatpush2.msra.mxu0 0.0
    %298 = vmatprep.subr.mxu0 0.0
    %299 = vmatpush2.msra.mxu0 0.0
    %300 = vmatprep.subr.mxu0 0.0
    %301 = vmatpush2.msra.mxu0 0.0
    %302 = vmatprep.subr.mxu0 0.0
    %303 = vmatpush2.msra.mxu0 0.0
    %304 = vmatprep.subr.mxu0 0.0
    %305 = vmatpush2.msra.mxu0 0.0
    %306 = vmatprep.subr.mxu0 0.0
    %307 = vmatpush2.msra.mxu0 0.0
    %308 = vmatprep.mubr.f32.mxu0 0.0
    %309 = vmatmul.mubr.f32.gmra.mxu0 %v220
    %v310 = vpop.f32.mrf.mxu0
    %v311 = vadd.f32 %v242, %v310
    %v312 = vpop.f32.mrf.mxu0
    %313 = vdwg.mxu0
    %v314 = vld [vmem:[%s9] sm:$0x1]
    %v316 = vlaneseq
    %v317 = vshrl.u32 %v316, 7
    %v318 = vsub.s32 0, %v317
    %v319 = vrot.slane %v314, %v318
    %v321 = vmul.f32 %v311, %v319
    %v322 = vld [vmem:[%s10] sm:$0x1]
    %v324 = vlaneseq
    %v325 = vshrl.u32 %v324, 7
    %v326 = vsub.s32 0, %v325
    %v327 = vrot.slane %v322, %v326
    %v329 = vadd.f32 %v321, %v327
    %v330 = vmax.f32 %v329, 0.0
    %v331 = vld [vmem:[#allocation8] sm:$0xff]
    %v332 = vld [vmem:[#allocation8 + $0x8] sm:$0xff]
    %v333 = vld [vmem:[#allocation8 + $0x10] sm:$0xff]
    %v334 = vld [vmem:[#allocation8 + $0x18] sm:$0xff]
    %v335 = vld [vmem:[#allocation8 + $0x20] sm:$0xff]
    %v336 = vld [vmem:[#allocation8 + $0x28] sm:$0xff]
    %v337 = vld [vmem:[#allocation8 + $0x30] sm:$0xff]
    %v338 = vld [vmem:[#allocation8 + $0x38] sm:$0xff]
    %v339 = vld [vmem:[#allocation8 + $0x40] sm:$0xff]
    %v340 = vld [vmem:[#allocation8 + $0x48] sm:$0xff]
    %v341 = vld [vmem:[#allocation8 + $0x50] sm:$0xff]
    %v342 = vld [vmem:[#allocation8 + $0x58] sm:$0xff]
    %v343 = vld [vmem:[#allocation8 + $0x60] sm:$0xff]
    %v344 = vld [vmem:[#allocation8 + $0x68] sm:$0xff]
    %v345 = vld [vmem:[#allocation8 + $0x70] sm:$0xff]
    %v346 = vld [vmem:[#allocation8 + $0x78] sm:$0xff]
    %v347 = vld [vmem:[%s12] sm:$0x1]
    %v349 = vlaneseq
    %v350 = vshrl.u32 %v349, 7
    %v351 = vsub.s32 0, %v350
    %v352 = vrot.slane %v347, %v351
    %354 = vmatprep.subr.mxu0 0.0
    %355 = vmatpush1.msra.mxu0 %v346
    %356 = vmatprep.subr.mxu0 0.0
    %357 = vmatpush1.msra.mxu0 %v345
    %358 = vmatprep.subr.mxu0 0.0
    %359 = vmatpush1.msra.mxu0 %v344
    %360 = vmatprep.subr.mxu0 0.0
    %361 = vmatpush1.msra.mxu0 %v343
    %362 = vmatprep.subr.mxu0 0.0
    %363 = vmatpush1.msra.mxu0 %v342
    %364 = vmatprep.subr.mxu0 0.0
    %365 = vmatpush1.msra.mxu0 %v341
    %366 = vmatprep.subr.mxu0 0.0
    %367 = vmatpush1.msra.mxu0 %v340
    %368 = vmatprep.subr.mxu0 0.0
    %369 = vmatpush1.msra.mxu0 %v339
    %370 = vmatprep.subr.mxu0 0.0
    %371 = vmatpush1.msra.mxu0 %v338
    %372 = vmatprep.subr.mxu0 0.0
    %373 = vmatpush1.msra.mxu0 %v337
    %374 = vmatprep.subr.mxu0 0.0
    %375 = vmatpush1.msra.mxu0 %v336
    %376 = vmatprep.subr.mxu0 0.0
    %377 = vmatpush1.msra.mxu0 %v335
    %378 = vmatprep.subr.mxu0 0.0
    %379 = vmatpush1.msra.mxu0 %v334
    %380 = vmatprep.subr.mxu0 0.0
    %381 = vmatpush1.msra.mxu0 %v333
    %382 = vmatprep.subr.mxu0 0.0
    %383 = vmatpush1.msra.mxu0 %v332
    %384 = vmatprep.subr.mxu0 0.0
    %385 = vmatpush1.msra.mxu0 %v331
    %386 = vmatprep.subr.mxu0 0.0
    %387 = vmatpush2.msra.mxu0 0.0
    %388 = vmatprep.subr.mxu0 0.0
    %389 = vmatpush2.msra.mxu0 0.0
    %390 = vmatprep.subr.mxu0 0.0
    %391 = vmatpush2.msra.mxu0 0.0
    %392 = vmatprep.subr.mxu0 0.0
    %393 = vmatpush2.msra.mxu0 0.0
    %394 = vmatprep.subr.mxu0 0.0
    %395 = vmatpush2.msra.mxu0 0.0
    %396 = vmatprep.subr.mxu0 0.0
    %397 = vmatpush2.msra.mxu0 0.0
    %398 = vmatprep.subr.mxu0 0.0
    %399 = vmatpush2.msra.mxu0 0.0
    %400 = vmatprep.subr.mxu0 0.0
    %401 = vmatpush2.msra.mxu0 0.0
    %402 = vmatprep.subr.mxu0 0.0
    %403 = vmatpush2.msra.mxu0 0.0
    %404 = vmatprep.subr.mxu0 0.0
    %405 = vmatpush2.msra.mxu0 0.0
    %406 = vmatprep.subr.mxu0 0.0
    %407 = vmatpush2.msra.mxu0 0.0
    %408 = vmatprep.subr.mxu0 0.0
    %409 = vmatpush2.msra.mxu0 0.0
    %410 = vmatprep.subr.mxu0 0.0
    %411 = vmatpush2.msra.mxu0 0.0
    %412 = vmatprep.subr.mxu0 0.0
    %413 = vmatpush2.msra.mxu0 0.0
    %414 = vmatprep.subr.mxu0 0.0
    %415 = vmatpush2.msra.mxu0 0.0
    %416 = vmatprep.subr.mxu0 0.0
    %417 = vmatpush2.msra.mxu0 0.0
    %418 = vmatprep.mubr.f32.mxu0 0.0
    %419 = vmatmul.mubr.f32.gmra.mxu0 %v330
    %v420 = vpop.f32.mrf.mxu0
    %v421 = vadd.f32 %v352, %v420
    %v422 = vpop.f32.mrf.mxu0
    %423 = vdwg.mxu0
    %v424 = vlaneseq
    %v425 = vand.u32 %v424, 127
    %vm426 = vcmp.lt.s32.totalorder %v425, 10
    %v427 = vsel %vm426, %v421, -1e+30
    %428 = vmax.xlane.f32.xlu0 %v427
    %v429 = vpop.xlane.xlu0 %428
    %v430 = vsub.f32 %v421, %v429
    %v431 = vmul.f32 %v430, 1.442695
    %v432 = vpow.pop %v431
    %v433 = vsel %vm426, %v432, 0.0
    %434 = vadd.xlane.f32.xlu0 %v433
    %v435 = vpop.xlane.xlu0 %434
    %v436 = vlog2.pop %v435
    %v437 = vmul.f32 %v436, 0.6931472
    %v438 = vsub.f32 %v430, %v437
    %vm439 = vcmask 80896
    %440 = vst.msk [vmem:[#allocation10] sm:$0xff] %vm439, %v438
    // Predicated region
    $region70: #{tpu_custom_call.1} parent=1 // pred_check
      _
    $region71: #{tpu_custom_call.1} parent=1 // pred_check_branch
      %442 = sbr.rel (0) target = $region73
    $region72: #{tpu_custom_call.1} parent=1 // pred_region
      %s444 = ssub.s32 128, 128
      %445 = vsyncadd [#allocation4], %s444
      %s447 = sshll.u32 [#allocation10], 4
      %s448 = int_to_ptr.vmem [resolvable:$true] %s447
      %450 = dma.vmem_to_hbm [thread:$0]  %s448, 128, %s13, [#allocation4]
    $region73: #{tpu_custom_call.1} parent=1 // pred_fallthru
      _
    // Predicated region
    $region74: #{tpu_custom_call.1} parent=1 // pred_check
      _
    $region75: #{tpu_custom_call.1} parent=1 // pred_check_branch
      %452 = sbr.rel (0) target = $region77
    $region76: #{tpu_custom_call.1} parent=1 // pred_region
      %453 = dma.done [#allocation4], 128
    $region77: #{tpu_custom_call.1} parent=1 // pred_fallthru
      _
    %454 = vsyncpa [#allocation3], 1
    %455 = vsyncpa [#allocation6], 1
    %456 = vsyncpa [#allocation9], 1
    %457 = vsyncpa [#allocation4], 1

</llo_original>
